<compile_context>
chip_gen: v7x
topology: tpu7x:2x2x1
jax: 0.10.0
libtpu: 0.0.40
codegen_flags: <defaults>
</compile_context>

<pallas_src>
import functools

import jax
import jax.numpy as jnp
from jax.experimental import pallas as pl
from jax.experimental.pallas import tpu as pltpu


def _round_up(n, m):
    return ((n + m - 1) // m) * m


def _cdiv(a, b):
    return (a + b - 1) // b


def _linear_softmax_pool_kernel(x_ref, o_ref, num_acc, den_acc, *, seq_len,
                                t_block, mask_time):
    """One (bt, tt, C) tile: accumulate sum_t(x^2) and sum_t(x) in f32.

    Grid = (batch blocks [parallel], time blocks [arbitrary/reduction]).
    The output block index is constant along the time axis, so o_ref stays
    resident; it is only written on the last time step.
    """
    kt = pl.program_id(1)

    @pl.when(kt == 0)
    def _init():
        num_acc[...] = jnp.zeros_like(num_acc)
        den_acc[...] = jnp.zeros_like(den_acc)

    x = x_ref[...].astype(jnp.float32)          # (bt, tt, C): one read of x
    if mask_time:
        # Last time block may overrun seq_len; zero the padded rows so they
        # contribute nothing to either sum (cheap VPU work, kernel is
        # HBM-bound).
        t_idx = kt * t_block + jax.lax.broadcasted_iota(jnp.int32, x.shape, 1)
        x = jnp.where(t_idx < seq_len, x, 0.0)

    num_acc[...] += jnp.sum(x * x, axis=1)      # (bt, C)  sum_t(x^2)
    den_acc[...] += jnp.sum(x, axis=1)          # (bt, C)  sum_t(x)

    @pl.when(kt == pl.num_programs(1) - 1)
    def _finalize():
        # Division by zero gives Inf/NaN, matching torch.sum(x**2)/torch.sum(x).
        o_ref[...] = (num_acc[...] / den_acc[...]).astype(o_ref.dtype)


def linear_softmax_pool(x, *, target_block_bytes=8 * 1024 * 1024):
    """x: (B, T, C) -> (B, C) == sum_t(x^2) / sum_t(x). dtype preserved."""
    B, T, C = x.shape
    itemsize = jnp.dtype(x.dtype).itemsize
    row_bytes = T * C * itemsize                 # one batch row, full time

    # --- tile selection (no wrapper-side padding copies) -------------------
    bt_min = B if B < 8 else 8
    if bt_min * row_bytes <= target_block_bytes:
        # Whole time axis fits in a single block per batch tile.
        tt = T
        if B <= 8:
            bt = B                               # out block (B, C): full dims
        else:
            budget_bt = (target_block_bytes // row_bytes) // 8 * 8
            # Keep >=2 batch blocks when possible so both v7x TCs get work.
            bt = max(8, min(budget_bt, (B // 8) * 8, _round_up(_cdiv(B, 2), 8)))
    else:
        # Long sequence: tile the time axis and accumulate across it.
        bt = bt_min
        if T <= 8:
            tt = T
        else:
            tt = (target_block_bytes // (bt * C * itemsize)) // 8 * 8
            tt = max(8, min(tt, (T // 8) * 8))
    mask_time = (T % tt) != 0

    grid = (_cdiv(B, bt), _cdiv(T, tt))
    # NOTE: when B <= 8 and the whole problem is one grid step, the second
    # v7x TensorCore idles; acceptable for tiny batches (the work is tiny too).

    block_bytes = bt * tt * C * itemsize
    vmem_limit = max(40 * 1024 * 1024, 2 * block_bytes + 8 * 1024 * 1024)

    kernel = functools.partial(_linear_softmax_pool_kernel,
                               seq_len=T, t_block=tt, mask_time=mask_time)

    cost = pl.CostEstimate(
        flops=3 * B * T * C,                     # x*x, += num, += den
        transcendentals=0,
        bytes_accessed=B * T * C * itemsize + B * C * itemsize,
    )

    return pl.pallas_call(
        kernel,
        out_shape=jax.ShapeDtypeStruct((B, C), x.dtype),
        grid_spec=pltpu.PrefetchScalarGridSpec(
            num_scalar_prefetch=0,
            grid=grid,
            in_specs=[pl.BlockSpec((bt, tt, C), lambda b, t: (b, t, 0))],
            out_specs=pl.BlockSpec((bt, C), lambda b, t: (b, 0)),
            scratch_shapes=[
                pltpu.VMEM((bt, C), jnp.float32),   # running sum_t(x^2)
                pltpu.VMEM((bt, C), jnp.float32),   # running sum_t(x)
            ],
        ),
        compiler_params=pltpu.CompilerParams(
            dimension_semantics=("parallel", "arbitrary"),
            vmem_limit_bytes=vmem_limit,
        ),
        cost_estimate=cost,
    )(x)


def linear_softmax_pool_reference(x):
    return jnp.sum(x * x, axis=1) / jnp.sum(x, axis=1)


if __name__ == "__main__":
    key = jax.random.PRNGKey(0)
    B, T, C = 2, 8, 32                           # batch, time, n_classes

    # MIL pooling is applied to non-negative per-class scores; use (0, 1)
    # uniforms so sum_t(x) is well-conditioned (matches sigmoid-output usage).
    x = jax.random.uniform(key, (B, T, C), dtype=jnp.float32,
                           minval=0.05, maxval=1.0)

    out = linear_softmax_pool(x)
    out = jax.block_until_ready(out)

    ref = linear_softmax_pool_reference(x)
    assert out.shape == (B, C)
    assert jnp.allclose(out, ref, atol=1e-5, rtol=1e-5)

    print("KERNEL_OK")
</pallas_src>

<mosaic_0001>
module attributes {stable_mosaic.version = 11 : i64} {
  func.func @_linear_softmax_pool_kernel(%arg0: i32, %arg1: i32, %arg2: memref<2x8x32xf32, #tpu.memory_space<vmem>>, %arg3: memref<2x32xf32, #tpu.memory_space<vmem>>, %arg4: memref<2x32xf32, #tpu.memory_space<vmem>>, %arg5: memref<2x32xf32, #tpu.memory_space<vmem>>) attributes {dimension_semantics = [#tpu.dimension_semantics<parallel>, #tpu.dimension_semantics<arbitrary>], iteration_bounds = array<i64: 1, 1>, scalar_prefetch = 0 : i64, scratch_operands = 2 : i64, tpu.core_type = #tpu.core_type<tc>, window_params = [{transform_indices = @transform_0, window_bounds = array<i64: 2, 8, 32>}, {transform_indices = @transform_1, window_bounds = array<i64: 2, 32>}]} {
    %c0_i32 = arith.constant 0 : i32
    %0 = arith.cmpi eq, %arg1, %c0_i32 : i32
    %1 = arith.extui %0 : i1 to i32
    %c0_i32_0 = arith.constant 0 : i32
    %2 = arith.cmpi ne, %1, %c0_i32_0 : i32
    scf.if %2 {
      %cst_14 = arith.constant 0.000000e+00 : f32
      %16 = vector.broadcast %cst_14 : f32 to vector<2x32xf32>
      %c0_15 = arith.constant 0 : index
      %c0_16 = arith.constant 0 : index
      %17 = vector.load %arg4[%c0_15, %c0_16] : memref<2x32xf32, #tpu.memory_space<vmem>>, vector<2x32xf32>
      tpu.vector_store %arg4[%c0_15, %c0_16], %16 {strides = array<i32>} : memref<2x32xf32, #tpu.memory_space<vmem>>, vector<2x32xf32>,
      %cst_17 = arith.constant 0.000000e+00 : f32
      %18 = vector.broadcast %cst_17 : f32 to vector<2x32xf32>
      %c0_18 = arith.constant 0 : index
      %c0_19 = arith.constant 0 : index
      %19 = vector.load %arg5[%c0_18, %c0_19] : memref<2x32xf32, #tpu.memory_space<vmem>>, vector<2x32xf32>
      tpu.vector_store %arg5[%c0_18, %c0_19], %18 {strides = array<i32>} : memref<2x32xf32, #tpu.memory_space<vmem>>, vector<2x32xf32>,
    } else {
    }
    %c0 = arith.constant 0 : index
    %c0_1 = arith.constant 0 : index
    %c0_2 = arith.constant 0 : index
    %3 = vector.load %arg2[%c0, %c0_1, %c0_2] : memref<2x8x32xf32, #tpu.memory_space<vmem>>, vector<2x8x32xf32>
    %c0_3 = arith.constant 0 : index
    %c0_4 = arith.constant 0 : index
    %4 = vector.load %arg4[%c0_3, %c0_4] : memref<2x32xf32, #tpu.memory_space<vmem>>, vector<2x32xf32>
    %5 = arith.mulf %3, %3 : vector<2x8x32xf32>
    %cst = arith.constant dense<0.000000e+00> : vector<2x32xf32>
    %6 = vector.multi_reduction <add>, %5, %cst [1] : vector<2x8x32xf32> to vector<2x32xf32>
    %7 = arith.addf %4, %6 : vector<2x32xf32>
    %c0_5 = arith.constant 0 : index
    %c0_6 = arith.constant 0 : index
    %8 = vector.load %arg4[%c0_5, %c0_6] : memref<2x32xf32, #tpu.memory_space<vmem>>, vector<2x32xf32>
    tpu.vector_store %arg4[%c0_5, %c0_6], %7 {strides = array<i32>} : memref<2x32xf32, #tpu.memory_space<vmem>>, vector<2x32xf32>,
    %c0_7 = arith.constant 0 : index
    %c0_8 = arith.constant 0 : index
    %9 = vector.load %arg5[%c0_7, %c0_8] : memref<2x32xf32, #tpu.memory_space<vmem>>, vector<2x32xf32>
    %cst_9 = arith.constant dense<0.000000e+00> : vector<2x32xf32>
    %10 = vector.multi_reduction <add>, %3, %cst_9 [1] : vector<2x8x32xf32> to vector<2x32xf32>
    %11 = arith.addf %9, %10 : vector<2x32xf32>
    %c0_10 = arith.constant 0 : index
    %c0_11 = arith.constant 0 : index
    %12 = vector.load %arg5[%c0_10, %c0_11] : memref<2x32xf32, #tpu.memory_space<vmem>>, vector<2x32xf32>
    tpu.vector_store %arg5[%c0_10, %c0_11], %11 {strides = array<i32>} : memref<2x32xf32, #tpu.memory_space<vmem>>, vector<2x32xf32>,
    %c0_i32_12 = arith.constant 0 : i32
    %13 = arith.cmpi eq, %arg1, %c0_i32_12 : i32
    %14 = arith.extui %13 : i1 to i32
    %c0_i32_13 = arith.constant 0 : i32
    %15 = arith.cmpi ne, %14, %c0_i32_13 : i32
    scf.if %15 {
      %c0_14 = arith.constant 0 : index
      %c0_15 = arith.constant 0 : index
      %16 = vector.load %arg4[%c0_14, %c0_15] : memref<2x32xf32, #tpu.memory_space<vmem>>, vector<2x32xf32>
      %c0_16 = arith.constant 0 : index
      %c0_17 = arith.constant 0 : index
      %17 = vector.load %arg5[%c0_16, %c0_17] : memref<2x32xf32, #tpu.memory_space<vmem>>, vector<2x32xf32>
      %18 = arith.divf %16, %17 : vector<2x32xf32>
      %c0_18 = arith.constant 0 : index
      %c0_19 = arith.constant 0 : index
      %19 = vector.load %arg3[%c0_18, %c0_19] : memref<2x32xf32, #tpu.memory_space<vmem>>, vector<2x32xf32>
      tpu.vector_store %arg3[%c0_18, %c0_19], %18 {strides = array<i32>} : memref<2x32xf32, #tpu.memory_space<vmem>>, vector<2x32xf32>,
    } else {
    }
    return
  }
  func.func @transform_0(%arg0: i32, %arg1: i32) -> (i32, i32, i32) {
    %c0_i32 = arith.constant 0 : i32
    %c0_i32_0 = arith.constant 0 : i32
    return %arg0, %arg1, %c0_i32 : i32, i32, i32
  }
  func.func @transform_1(%arg0: i32, %arg1: i32) -> (i32, i32) {
    %c0_i32 = arith.constant 0 : i32
    %c0_i32_0 = arith.constant 0 : i32
    return %arg0, %c0_i32 : i32, i32
  }
}

</mosaic_0001>

<llo_original>
// kernel: tpu_custom_call.1
$region0: #{tpu_custom_call.1}
  #allocation0 [shape = 'u32[]', space=smem, size = 0x4, offset = 0x4, fixed_abs, tag = 'smem constant byte address 0x4 - core index']
  #allocation1 [shape = 'u32[144,128]{1,0:T(1,128)}', space=vmem, size = 0x12000, scoped, tag = 'internal scratch']
  #allocation2 [shape = 'f32[2,32]{1,0:T(2,128)}', space=vmem, size = 0x400, scoped, tag = 'scratch operand']
  #allocation3 [shape = 'f32[2,32]{1,0:T(2,128)}', space=vmem, size = 0x400, scoped, tag = 'scratch operand']
  %s0 = inlined_call_operand.hbm [shape: f32[2,8,32], index: 0, kind: input, shape index: {}]
  %s1 = inlined_call_operand.hbm [shape: f32[2,32], index: 1, kind: output, shape index: {}]
  %s2 = sld [smem:[#allocation0]]
  $region26: #{tpu_custom_call.1} parent=0
    _
  %s4 = ssub.s32 1, %s2
  %s5 = scalar_select 0, %s4, %s2
  $region1: #{tpu_custom_call.1} parent=0
    #allocation4 [shape = 'u8[8192]{0}', space=vmem, size = 0x2000, scoped, tag = 'input window, operand 0, single buffered']
    #allocation5 [shape = 's32[1]{0}', space=sflag, size = 0x4, scoped, tag = 'scoped memory for tpu_custom_call.1']
    #allocation6 [shape = 's32[1]{0}', space=sflag, size = 0x4, scoped, tag = 'scoped memory for tpu_custom_call.1']
    #allocation7 [shape = 'u8[1024]{0}', space=vmem, size = 0x400, scoped, tag = 'output window, operand 0, single buffered']
    %6 = vsyncpa [#allocation5], 0
    %7 = vsyncpa [#allocation6], 0
    // Predicated region
    $region2: #{tpu_custom_call.1} parent=1 // pred_check
      _
    $region3: #{tpu_custom_call.1} parent=1 // pred_check_branch
      %9 = sbr.rel (0) target = $region5
    $region4: #{tpu_custom_call.1} parent=1 // pred_region
      %s11 = ssub.s32 256, 256
      %12 = vsyncadd [#allocation5], %s11
      %s13 = sshll.u32 [#allocation4], 4
      %s14 = int_to_ptr.vmem [resolvable:$true] %s13
      %19 = dma.hbm_to_vmem [thread:$0]  %s0, 256, %s14, [#allocation5], 128, 128, 8
    $region5: #{tpu_custom_call.1} parent=1 // pred_fallthru
      _
    // Predicated region
    $region6: #{tpu_custom_call.1} parent=1 // pred_check
      _
    $region7: #{tpu_custom_call.1} parent=1 // pred_check_branch
      %21 = sbr.rel (0) target = $region9
    $region8: #{tpu_custom_call.1} parent=1 // pred_region
      %22 = dma.done [#allocation5], 256
    $region9: #{tpu_custom_call.1} parent=1 // pred_fallthru
      _
    %p23 = scmp.eq.s32.totalorder 0, 0
    // Predicated region
    $region10: #{tpu_custom_call.1} parent=1 // pred_check
      %p24 = pneg %p23
    $region11: #{tpu_custom_call.1} parent=1 // pred_check_branch
      %26 = sbr.rel (%p24) target = $region13
    $region12: #{tpu_custom_call.1} parent=1 // pred_region
      %vm27 = vcmask 254976
      %28 = vst.msk [vmem:[#allocation2] sm:$0x3] %vm27, 0.0
      %29 = vst.msk [vmem:[#allocation3] sm:$0x3] %vm27, 0.0
    $region13: #{tpu_custom_call.1} parent=1 // pred_fallthru
      _
    %v30 = vld [vmem:[#allocation4] sm:$0xff]
    %v31 = vld [vmem:[#allocation4 + $0x8] sm:$0xff]
    %v32 = vld [vmem:[#allocation2] sm:$0x3]
    %v33 = vmul.f32 %v30, %v30
    %v34 = vmul.f32 %v31, %v31
    %vm35 = vcmask 261120
    %v36 = vsel %vm35, %v33, 0.0
    %v37 = vrot.slane %v36, 4
    %v38 = vadd.f32 %v36, %v37
    %v39 = vrot.slane %v38, 2
    %v40 = vadd.f32 %v38, %v39
    %v41 = vrot.slane %v40, 1
    %v42 = vadd.f32 %v40, %v41
    %v43 = vsel %vm35, %v34, 0.0
    %v44 = vrot.slane %v43, 4
    %v45 = vadd.f32 %v43, %v44
    %v46 = vrot.slane %v45, 2
    %v47 = vadd.f32 %v45, %v46
    %v48 = vrot.slane %v47, 1
    %v49 = vadd.f32 %v47, %v48
    %vm52 = vcmask 1041409
    %v53 = vsel %vm52, %v49, %v42
    %v55 = vadd.f32 %v32, %v53
    %vm56 = vcmask 254976
    %57 = vst.msk [vmem:[#allocation2] sm:$0x3] %vm56, %v55
    %v58 = vld [vmem:[#allocation3] sm:$0x3]
    %v59 = vsel %vm35, %v30, 0.0
    %v60 = vrot.slane %v59, 4
    %v61 = vadd.f32 %v59, %v60
    %v62 = vrot.slane %v61, 2
    %v63 = vadd.f32 %v61, %v62
    %v64 = vrot.slane %v63, 1
    %v65 = vadd.f32 %v63, %v64
    %v66 = vsel %vm35, %v31, 0.0
    %v67 = vrot.slane %v66, 4
    %v68 = vadd.f32 %v66, %v67
    %v69 = vrot.slane %v68, 2
    %v70 = vadd.f32 %v68, %v69
    %v71 = vrot.slane %v70, 1
    %v72 = vadd.f32 %v70, %v71
    %v75 = vsel %vm52, %v72, %v65
    %v77 = vadd.f32 %v58, %v75
    %78 = vst.msk [vmem:[#allocation3] sm:$0x3] %vm56, %v77
    // Predicated region
    $region14: #{tpu_custom_call.1} parent=1 // pred_check
      %p79 = pneg %p23
    $region15: #{tpu_custom_call.1} parent=1 // pred_check_branch
      %81 = sbr.rel (%p79) target = $region17
    $region16: #{tpu_custom_call.1} parent=1 // pred_region
      %v82 = vld [vmem:[#allocation2] sm:$0x3]
      %v83 = vld [vmem:[#allocation3] sm:$0x3]
      %v84 = vrcp.pop %v83
      %v85 = vmul.f32 %v82, %v84
      %86 = vst.msk [vmem:[#allocation7] sm:$0x3] %vm56, %v85
    $region17: #{tpu_custom_call.1} parent=1 // pred_fallthru
      _
    // Predicated region
    $region18: #{tpu_custom_call.1} parent=1 // pred_check
      _
    $region19: #{tpu_custom_call.1} parent=1 // pred_check_branch
      %88 = sbr.rel (0) target = $region21
    $region20: #{tpu_custom_call.1} parent=1 // pred_region
      %s90 = ssub.s32 32, 32
      %91 = vsyncadd [#allocation6], %s90
      %s93 = sshll.u32 [#allocation7], 4
      %s94 = int_to_ptr.vmem [resolvable:$true] %s93
      %96 = dma.vmem_to_hbm [thread:$0]  %s94, 32, %s1, [#allocation6]
    $region21: #{tpu_custom_call.1} parent=1 // pred_fallthru
      _
    // Predicated region
    $region22: #{tpu_custom_call.1} parent=1 // pred_check
      _
    $region23: #{tpu_custom_call.1} parent=1 // pred_check_branch
      %98 = sbr.rel (0) target = $region25
    $region24: #{tpu_custom_call.1} parent=1 // pred_region
      %99 = dma.done [#allocation6], 32
    $region25: #{tpu_custom_call.1} parent=1 // pred_fallthru
      _
    %100 = vsyncpa [#allocation5], 1
    %101 = vsyncpa [#allocation6], 1

</llo_original>
